<compile_context>
chip_gen: v5e
topology: v5e:2x2
jax: 0.10.0
libtpu: 0.0.40
codegen_flags: <defaults>
</compile_context>

<pallas_src>
import functools

import jax
import jax.numpy as jnp
from jax.experimental import pallas as pl
from jax.experimental.pallas import tpu as pltpu


STATE_DIM = 16
ACTION_DIM = 8
HIDDEN_DIM = 256          # PyTorch default; multiple of 128 lanes
NUM_LAYERS = 3
RESIDUAL = True
LN_EPS = 1e-5


def _round_up(x, m):
    return ((x + m - 1) // m) * m


def _layernorm(x, gamma, beta):
    # PyTorch nn.LayerNorm: biased variance over last dim, eps inside rsqrt.
    mean = jnp.mean(x, axis=-1, keepdims=True)
    centered = x - mean
    var = jnp.mean(centered * centered, axis=-1, keepdims=True)
    inv = jax.lax.rsqrt(var + LN_EPS)
    return centered * inv * gamma + beta


def dynamics_kernel(state_ref, action_ref, *refs):
    """refs = [W0_s, W0_a, b0, g0, be0,
               (W_i, b_i, g_i, be_i) for i in 1..NUM_LAYERS-1,
               W_out, b_out,
               out_ref]"""
    out_ref = refs[-1]
    p = refs[:-1]

    state = state_ref[...]
    action = action_ref[...]

    # --- layer 0: split matmul replaces concat([state, action]) @ W0 ---------
    w0_s = p[0][...]
    w0_a = p[1][...]
    x = (jnp.dot(state.astype(w0_s.dtype), w0_s, preferred_element_type=jnp.float32)
         + jnp.dot(action.astype(w0_a.dtype), w0_a, preferred_element_type=jnp.float32)
         + p[2][...])
    x = _layernorm(x, p[3][...], p[4][...])
    x = jnp.maximum(x, 0.0)

    # --- layers 1..NUM_LAYERS-1: Linear -> LayerNorm -> ReLU (static unroll) --
    idx = 5
    for _ in range(NUM_LAYERS - 1):
        W = p[idx][...]
        b = p[idx + 1][...]
        gamma = p[idx + 2][...]
        beta = p[idx + 3][...]
        idx += 4
        x = jnp.dot(x.astype(W.dtype), W, preferred_element_type=jnp.float32) + b
        x = _layernorm(x, gamma, beta)
        x = jnp.maximum(x, 0.0)

    # --- output Linear back to state_dim -------------------------------------
    W_out = p[idx][...]
    b_out = p[idx + 1][...]
    y = jnp.dot(x.astype(W_out.dtype), W_out, preferred_element_type=jnp.float32) + b_out

    if RESIDUAL:
        y = y + state.astype(jnp.float32)

    out_ref[...] = y.astype(out_ref.dtype)


def init_params(key, state_dim, action_dim, hidden_dim, num_layers, residual):
    """Parameter init mimicking PyTorch defaults.

    Returns a flat list in kernel order:
      [W0_state, W0_action, b0, gamma0, beta0,
       W1, b1, gamma1, beta1, ..., W_out, b_out]
    Linear weights are stored as [in_features, out_features] (pre-transposed).
    """
    params = []
    in_dim = state_dim + action_dim

    # layer 0 (split into state / action halves along the input axis)
    key, kw, kb = jax.random.split(key, 3)
    bound = 1.0 / (in_dim ** 0.5)
    W0 = jax.random.uniform(kw, (in_dim, hidden_dim), jnp.float32, -bound, bound)
    b0 = jax.random.uniform(kb, (1, hidden_dim), jnp.float32, -bound, bound)
    params += [W0[:state_dim], W0[state_dim:], b0,
               jnp.ones((1, hidden_dim), jnp.float32),
               jnp.zeros((1, hidden_dim), jnp.float32)]

    # layers 1..num_layers-1
    for _ in range(num_layers - 1):
        key, kw, kb = jax.random.split(key, 3)
        bound = 1.0 / (hidden_dim ** 0.5)
        W = jax.random.uniform(kw, (hidden_dim, hidden_dim), jnp.float32, -bound, bound)
        b = jax.random.uniform(kb, (1, hidden_dim), jnp.float32, -bound, bound)
        params += [W, b,
                   jnp.ones((1, hidden_dim), jnp.float32),
                   jnp.zeros((1, hidden_dim), jnp.float32)]

    # output layer
    key, kw, kb = jax.random.split(key, 3)
    if residual:
        W_out = jax.random.uniform(kw, (hidden_dim, state_dim), jnp.float32, -0.001, 0.001)
        b_out = jnp.zeros((1, state_dim), jnp.float32)
    else:
        bound = 1.0 / (hidden_dim ** 0.5)
        W_out = jax.random.uniform(kw, (hidden_dim, state_dim), jnp.float32, -bound, bound)
        b_out = jax.random.uniform(kb, (1, state_dim), jnp.float32, -bound, bound)
    params += [W_out, b_out]
    return params


@functools.partial(jax.jit, static_argnames=("block_batch",))
def latent_dynamics_forward(state, action, params, *, block_batch=2048):
    """f(state, action) -> next state. Streams the batch through a 1-D grid."""
    batch, state_dim = state.shape
    action_dim = action.shape[1]

    # batch tile: multiple of 8 sublanes, capped at block_batch
    tb = min(block_batch, _round_up(max(batch, 1), 8))
    padded = pl.cdiv(batch, tb) * tb
    if padded != batch:
        pad = padded - batch
        state_p = jnp.pad(state, ((0, pad), (0, 0)))
        action_p = jnp.pad(action, ((0, pad), (0, 0)))
    else:
        state_p, action_p = state, action

    grid = (padded // tb,)

    # activations: tiled over batch; params: full-array, constant index_map
    # (resident in VMEM across all grid steps — DMA'd once).
    act_specs = [pl.BlockSpec((tb, state_dim), lambda i: (i, 0)),
                 pl.BlockSpec((tb, action_dim), lambda i: (i, 0))]
    param_specs = [pl.BlockSpec(p.shape, lambda i: (0, 0)) for p in params]
    out_spec = pl.BlockSpec((tb, state_dim), lambda i: (i, 0))

    out = pl.pallas_call(
        dynamics_kernel,
        out_shape=jax.ShapeDtypeStruct((padded, state_dim), state.dtype),
        grid=grid,
        in_specs=act_specs + param_specs,
        out_specs=out_spec,
        compiler_params=pltpu.CompilerParams(
            dimension_semantics=("parallel",)),   # shards batch tiles across TCs on v7x
    )(state_p, action_p, *params)

    return out[:batch] if padded != batch else out


def reference_forward(state, action, params):
    """Pure-JAX reference matching the PyTorch module (concat path)."""
    W0_s, W0_a, b0, g0, be0 = params[:5]
    W0 = jnp.concatenate([W0_s, W0_a], axis=0)
    x = jnp.concatenate([state, action], axis=-1) @ W0 + b0
    x = _layernorm(x, g0, be0)
    x = jnp.maximum(x, 0.0)
    idx = 5
    for _ in range(NUM_LAYERS - 1):
        W, b, g, be = params[idx:idx + 4]
        idx += 4
        x = x @ W + b
        x = _layernorm(x, g, be)
        x = jnp.maximum(x, 0.0)
    W_out, b_out = params[idx], params[idx + 1]
    y = x @ W_out + b_out
    return state + y if RESIDUAL else y


if __name__ == "__main__":
    key = jax.random.PRNGKey(0)
    k_state, k_action, k_params = jax.random.split(key, 3)

    params = init_params(k_params, STATE_DIM, ACTION_DIM, HIDDEN_DIM, NUM_LAYERS, RESIDUAL)

    # --- small-shape correctness check (batch=2) ------------------------------
    batch = 2
    state = jax.random.normal(k_state, (batch, STATE_DIM), jnp.float32)
    action = jax.random.normal(k_action, (batch, ACTION_DIM), jnp.float32)

    out = jax.block_until_ready(latent_dynamics_forward(state, action, params))
    ref = reference_forward(state, action, params)
    assert out.shape == (batch, STATE_DIM)
    assert jnp.allclose(out, ref, atol=1e-4, rtol=1e-4), "mismatch vs reference (batch=2)"

    # --- larger ragged batch: exercises the tiled, pipelined, padded grid path -
    big_batch = 4100
    state_b = jax.random.normal(k_state, (big_batch, STATE_DIM), jnp.float32)
    action_b = jax.random.normal(k_action, (big_batch, ACTION_DIM), jnp.float32)

    out_b = jax.block_until_ready(
        latent_dynamics_forward(state_b, action_b, params, block_batch=2048))
    ref_b = reference_forward(state_b, action_b, params)
    assert out_b.shape == (big_batch, STATE_DIM)
    assert jnp.allclose(out_b, ref_b, atol=1e-4, rtol=1e-4), "mismatch vs reference (big batch)"

    print("KERNEL_OK")
</pallas_src>

<mosaic_0001>
module attributes {stable_mosaic.version = 11 : i64} {
  func.func @dynamics_kernel(%arg0: i32, %arg1: memref<8x16xf32, #tpu.memory_space<vmem>>, %arg2: memref<8x8xf32, #tpu.memory_space<vmem>>, %arg3: memref<16x256xf32, #tpu.memory_space<vmem>>, %arg4: memref<8x256xf32, #tpu.memory_space<vmem>>, %arg5: memref<1x256xf32, #tpu.memory_space<vmem>>, %arg6: memref<1x256xf32, #tpu.memory_space<vmem>>, %arg7: memref<1x256xf32, #tpu.memory_space<vmem>>, %arg8: memref<256x256xf32, #tpu.memory_space<vmem>>, %arg9: memref<1x256xf32, #tpu.memory_space<vmem>>, %arg10: memref<1x256xf32, #tpu.memory_space<vmem>>, %arg11: memref<1x256xf32, #tpu.memory_space<vmem>>, %arg12: memref<256x256xf32, #tpu.memory_space<vmem>>, %arg13: memref<1x256xf32, #tpu.memory_space<vmem>>, %arg14: memref<1x256xf32, #tpu.memory_space<vmem>>, %arg15: memref<1x256xf32, #tpu.memory_space<vmem>>, %arg16: memref<256x16xf32, #tpu.memory_space<vmem>>, %arg17: memref<1x16xf32, #tpu.memory_space<vmem>>, %arg18: memref<8x16xf32, #tpu.memory_space<vmem>>) attributes {dimension_semantics = [#tpu.dimension_semantics<parallel>], iteration_bounds = array<i64: 1>, scalar_prefetch = 0 : i64, scratch_operands = 0 : i64, tpu.core_type = #tpu.core_type<tc>, window_params = [{transform_indices = @transform_0, window_bounds = array<i64: 8, 16>}, {transform_indices = @transform_1, window_bounds = array<i64: 8, 8>}, {pipeline_mode = #tpu.pipeline_mode<synchronous>, transform_indices = @transform_2, window_bounds = array<i64: 16, 256>}, {pipeline_mode = #tpu.pipeline_mode<synchronous>, transform_indices = @transform_3, window_bounds = array<i64: 8, 256>}, {pipeline_mode = #tpu.pipeline_mode<synchronous>, transform_indices = @transform_4, window_bounds = array<i64: 1, 256>}, {pipeline_mode = #tpu.pipeline_mode<synchronous>, transform_indices = @transform_5, window_bounds = array<i64: 1, 256>}, {pipeline_mode = #tpu.pipeline_mode<synchronous>, transform_indices = @transform_6, window_bounds = array<i64: 1, 256>}, {pipeline_mode = #tpu.pipeline_mode<synchronous>, transform_indices = @transform_7, window_bounds = array<i64: 256, 256>}, {pipeline_mode = #tpu.pipeline_mode<synchronous>, transform_indices = @transform_8, window_bounds = array<i64: 1, 256>}, {pipeline_mode = #tpu.pipeline_mode<synchronous>, transform_indices = @transform_9, window_bounds = array<i64: 1, 256>}, {pipeline_mode = #tpu.pipeline_mode<synchronous>, transform_indices = @transform_10, window_bounds = array<i64: 1, 256>}, {pipeline_mode = #tpu.pipeline_mode<synchronous>, transform_indices = @transform_11, window_bounds = array<i64: 256, 256>}, {pipeline_mode = #tpu.pipeline_mode<synchronous>, transform_indices = @transform_12, window_bounds = array<i64: 1, 256>}, {pipeline_mode = #tpu.pipeline_mode<synchronous>, transform_indices = @transform_13, window_bounds = array<i64: 1, 256>}, {pipeline_mode = #tpu.pipeline_mode<synchronous>, transform_indices = @transform_14, window_bounds = array<i64: 1, 256>}, {pipeline_mode = #tpu.pipeline_mode<synchronous>, transform_indices = @transform_15, window_bounds = array<i64: 256, 16>}, {pipeline_mode = #tpu.pipeline_mode<synchronous>, transform_indices = @transform_16, window_bounds = array<i64: 1, 16>}, {transform_indices = @transform_17, window_bounds = array<i64: 8, 16>}]} {
    %c0 = arith.constant 0 : index
    %c0_0 = arith.constant 0 : index
    %0 = vector.load %arg1[%c0, %c0_0] : memref<8x16xf32, #tpu.memory_space<vmem>>, vector<8x16xf32>
    %c0_1 = arith.constant 0 : index
    %c0_2 = arith.constant 0 : index
    %1 = vector.load %arg2[%c0_1, %c0_2] : memref<8x8xf32, #tpu.memory_space<vmem>>, vector<8x8xf32>
    %c0_3 = arith.constant 0 : index
    %c0_4 = arith.constant 0 : index
    %2 = vector.load %arg3[%c0_3, %c0_4] : memref<16x256xf32, #tpu.memory_space<vmem>>, vector<16x256xf32>
    %c0_5 = arith.constant 0 : index
    %c0_6 = arith.constant 0 : index
    %3 = vector.load %arg4[%c0_5, %c0_6] : memref<8x256xf32, #tpu.memory_space<vmem>>, vector<8x256xf32>
    %cst = arith.constant dense<0.000000e+00> : vector<8x256xf32>
    %4 = tpu.matmul %0, %2, %cst {dimension_numbers = #tpu.dot_dimension_numbers<[1], [0], [0], [1], [0, 0, 1, 1], [], []>} : vector<8x16xf32>, vector<16x256xf32>, vector<8x256xf32> -> vector<8x256xf32>
    %cst_7 = arith.constant dense<0.000000e+00> : vector<8x256xf32>
    %5 = tpu.matmul %1, %3, %cst_7 {dimension_numbers = #tpu.dot_dimension_numbers<[1], [0], [0], [1], [0, 0, 1, 1], [], []>} : vector<8x8xf32>, vector<8x256xf32>, vector<8x256xf32> -> vector<8x256xf32>
    %6 = arith.addf %4, %5 : vector<8x256xf32>
    %c0_8 = arith.constant 0 : index
    %c0_9 = arith.constant 0 : index
    %7 = vector.load %arg5[%c0_8, %c0_9] : memref<1x256xf32, #tpu.memory_space<vmem>>, vector<1x256xf32>
    %8 = vector.broadcast %7 : vector<1x256xf32> to vector<8x256xf32>
    %9 = arith.addf %6, %8 : vector<8x256xf32>
    %c0_10 = arith.constant 0 : index
    %c0_11 = arith.constant 0 : index
    %10 = vector.load %arg6[%c0_10, %c0_11] : memref<1x256xf32, #tpu.memory_space<vmem>>, vector<1x256xf32>
    %c0_12 = arith.constant 0 : index
    %c0_13 = arith.constant 0 : index
    %11 = vector.load %arg7[%c0_12, %c0_13] : memref<1x256xf32, #tpu.memory_space<vmem>>, vector<1x256xf32>
    %cst_14 = arith.constant dense<0.000000e+00> : vector<8xf32>
    %12 = vector.multi_reduction <add>, %9, %cst_14 [1] : vector<8x256xf32> to vector<8xf32>
    %13 = vector.shape_cast %12 : vector<8xf32> to vector<8x1xf32>
    %cst_15 = arith.constant 2.560000e+02 : f32
    %14 = vector.broadcast %cst_15 : f32 to vector<8x1xf32>
    %15 = arith.divf %13, %14 : vector<8x1xf32>
    %16 = vector.broadcast %15 : vector<8x1xf32> to vector<8x256xf32>
    %17 = arith.subf %9, %16 : vector<8x256xf32>
    %18 = arith.mulf %17, %17 : vector<8x256xf32>
    %cst_16 = arith.constant dense<0.000000e+00> : vector<8xf32>
    %19 = vector.multi_reduction <add>, %18, %cst_16 [1] : vector<8x256xf32> to vector<8xf32>
    %20 = vector.shape_cast %19 : vector<8xf32> to vector<8x1xf32>
    %cst_17 = arith.constant 2.560000e+02 : f32
    %21 = vector.broadcast %cst_17 : f32 to vector<8x1xf32>
    %22 = arith.divf %20, %21 : vector<8x1xf32>
    %cst_18 = arith.constant 9.99999974E-6 : f32
    %23 = vector.broadcast %cst_18 : f32 to vector<8x1xf32>
    %24 = arith.addf %22, %23 : vector<8x1xf32>
    %25 = math.rsqrt %24 : vector<8x1xf32>
    %26 = vector.broadcast %25 : vector<8x1xf32> to vector<8x256xf32>
    %27 = arith.mulf %17, %26 : vector<8x256xf32>
    %28 = vector.broadcast %10 : vector<1x256xf32> to vector<8x256xf32>
    %29 = arith.mulf %27, %28 : vector<8x256xf32>
    %30 = vector.broadcast %11 : vector<1x256xf32> to vector<8x256xf32>
    %31 = arith.addf %29, %30 : vector<8x256xf32>
    %cst_19 = arith.constant 0.000000e+00 : f32
    %32 = vector.broadcast %cst_19 : f32 to vector<8x256xf32>
    %33 = arith.maximumf %31, %32 : vector<8x256xf32>
    %c0_20 = arith.constant 0 : index
    %c0_21 = arith.constant 0 : index
    %34 = vector.load %arg8[%c0_20, %c0_21] : memref<256x256xf32, #tpu.memory_space<vmem>>, vector<256x256xf32>
    %c0_22 = arith.constant 0 : index
    %c0_23 = arith.constant 0 : index
    %35 = vector.load %arg9[%c0_22, %c0_23] : memref<1x256xf32, #tpu.memory_space<vmem>>, vector<1x256xf32>
    %c0_24 = arith.constant 0 : index
    %c0_25 = arith.constant 0 : index
    %36 = vector.load %arg10[%c0_24, %c0_25] : memref<1x256xf32, #tpu.memory_space<vmem>>, vector<1x256xf32>
    %c0_26 = arith.constant 0 : index
    %c0_27 = arith.constant 0 : index
    %37 = vector.load %arg11[%c0_26, %c0_27] : memref<1x256xf32, #tpu.memory_space<vmem>>, vector<1x256xf32>
    %cst_28 = arith.constant dense<0.000000e+00> : vector<8x256xf32>
    %38 = tpu.matmul %33, %34, %cst_28 {dimension_numbers = #tpu.dot_dimension_numbers<[1], [0], [0], [1], [0, 0, 1, 1], [], []>} : vector<8x256xf32>, vector<256x256xf32>, vector<8x256xf32> -> vector<8x256xf32>
    %39 = vector.broadcast %35 : vector<1x256xf32> to vector<8x256xf32>
    %40 = arith.addf %38, %39 : vector<8x256xf32>
    %cst_29 = arith.constant dense<0.000000e+00> : vector<8xf32>
    %41 = vector.multi_reduction <add>, %40, %cst_29 [1] : vector<8x256xf32> to vector<8xf32>
    %42 = vector.shape_cast %41 : vector<8xf32> to vector<8x1xf32>
    %cst_30 = arith.constant 2.560000e+02 : f32
    %43 = vector.broadcast %cst_30 : f32 to vector<8x1xf32>
    %44 = arith.divf %42, %43 : vector<8x1xf32>
    %45 = vector.broadcast %44 : vector<8x1xf32> to vector<8x256xf32>
    %46 = arith.subf %40, %45 : vector<8x256xf32>
    %47 = arith.mulf %46, %46 : vector<8x256xf32>
    %cst_31 = arith.constant dense<0.000000e+00> : vector<8xf32>
    %48 = vector.multi_reduction <add>, %47, %cst_31 [1] : vector<8x256xf32> to vector<8xf32>
    %49 = vector.shape_cast %48 : vector<8xf32> to vector<8x1xf32>
    %cst_32 = arith.constant 2.560000e+02 : f32
    %50 = vector.broadcast %cst_32 : f32 to vector<8x1xf32>
    %51 = arith.divf %49, %50 : vector<8x1xf32>
    %cst_33 = arith.constant 9.99999974E-6 : f32
    %52 = vector.broadcast %cst_33 : f32 to vector<8x1xf32>
    %53 = arith.addf %51, %52 : vector<8x1xf32>
    %54 = math.rsqrt %53 : vector<8x1xf32>
    %55 = vector.broadcast %54 : vector<8x1xf32> to vector<8x256xf32>
    %56 = arith.mulf %46, %55 : vector<8x256xf32>
    %57 = vector.broadcast %36 : vector<1x256xf32> to vector<8x256xf32>
    %58 = arith.mulf %56, %57 : vector<8x256xf32>
    %59 = vector.broadcast %37 : vector<1x256xf32> to vector<8x256xf32>
    %60 = arith.addf %58, %59 : vector<8x256xf32>
    %cst_34 = arith.constant 0.000000e+00 : f32
    %61 = vector.broadcast %cst_34 : f32 to vector<8x256xf32>
    %62 = arith.maximumf %60, %61 : vector<8x256xf32>
    %c0_35 = arith.constant 0 : index
    %c0_36 = arith.constant 0 : index
    %63 = vector.load %arg12[%c0_35, %c0_36] : memref<256x256xf32, #tpu.memory_space<vmem>>, vector<256x256xf32>
    %c0_37 = arith.constant 0 : index
    %c0_38 = arith.constant 0 : index
    %64 = vector.load %arg13[%c0_37, %c0_38] : memref<1x256xf32, #tpu.memory_space<vmem>>, vector<1x256xf32>
    %c0_39 = arith.constant 0 : index
    %c0_40 = arith.constant 0 : index
    %65 = vector.load %arg14[%c0_39, %c0_40] : memref<1x256xf32, #tpu.memory_space<vmem>>, vector<1x256xf32>
    %c0_41 = arith.constant 0 : index
    %c0_42 = arith.constant 0 : index
    %66 = vector.load %arg15[%c0_41, %c0_42] : memref<1x256xf32, #tpu.memory_space<vmem>>, vector<1x256xf32>
    %cst_43 = arith.constant dense<0.000000e+00> : vector<8x256xf32>
    %67 = tpu.matmul %62, %63, %cst_43 {dimension_numbers = #tpu.dot_dimension_numbers<[1], [0], [0], [1], [0, 0, 1, 1], [], []>} : vector<8x256xf32>, vector<256x256xf32>, vector<8x256xf32> -> vector<8x256xf32>
    %68 = vector.broadcast %64 : vector<1x256xf32> to vector<8x256xf32>
    %69 = arith.addf %67, %68 : vector<8x256xf32>
    %cst_44 = arith.constant dense<0.000000e+00> : vector<8xf32>
    %70 = vector.multi_reduction <add>, %69, %cst_44 [1] : vector<8x256xf32> to vector<8xf32>
    %71 = vector.shape_cast %70 : vector<8xf32> to vector<8x1xf32>
    %cst_45 = arith.constant 2.560000e+02 : f32
    %72 = vector.broadcast %cst_45 : f32 to vector<8x1xf32>
    %73 = arith.divf %71, %72 : vector<8x1xf32>
    %74 = vector.broadcast %73 : vector<8x1xf32> to vector<8x256xf32>
    %75 = arith.subf %69, %74 : vector<8x256xf32>
    %76 = arith.mulf %75, %75 : vector<8x256xf32>
    %cst_46 = arith.constant dense<0.000000e+00> : vector<8xf32>
    %77 = vector.multi_reduction <add>, %76, %cst_46 [1] : vector<8x256xf32> to vector<8xf32>
    %78 = vector.shape_cast %77 : vector<8xf32> to vector<8x1xf32>
    %cst_47 = arith.constant 2.560000e+02 : f32
    %79 = vector.broadcast %cst_47 : f32 to vector<8x1xf32>
    %80 = arith.divf %78, %79 : vector<8x1xf32>
    %cst_48 = arith.constant 9.99999974E-6 : f32
    %81 = vector.broadcast %cst_48 : f32 to vector<8x1xf32>
    %82 = arith.addf %80, %81 : vector<8x1xf32>
    %83 = math.rsqrt %82 : vector<8x1xf32>
    %84 = vector.broadcast %83 : vector<8x1xf32> to vector<8x256xf32>
    %85 = arith.mulf %75, %84 : vector<8x256xf32>
    %86 = vector.broadcast %65 : vector<1x256xf32> to vector<8x256xf32>
    %87 = arith.mulf %85, %86 : vector<8x256xf32>
    %88 = vector.broadcast %66 : vector<1x256xf32> to vector<8x256xf32>
    %89 = arith.addf %87, %88 : vector<8x256xf32>
    %cst_49 = arith.constant 0.000000e+00 : f32
    %90 = vector.broadcast %cst_49 : f32 to vector<8x256xf32>
    %91 = arith.maximumf %89, %90 : vector<8x256xf32>
    %c0_50 = arith.constant 0 : index
    %c0_51 = arith.constant 0 : index
    %92 = vector.load %arg16[%c0_50, %c0_51] : memref<256x16xf32, #tpu.memory_space<vmem>>, vector<256x16xf32>
    %c0_52 = arith.constant 0 : index
    %c0_53 = arith.constant 0 : index
    %93 = vector.load %arg17[%c0_52, %c0_53] : memref<1x16xf32, #tpu.memory_space<vmem>>, vector<1x16xf32>
    %cst_54 = arith.constant dense<0.000000e+00> : vector<8x16xf32>
    %94 = tpu.matmul %91, %92, %cst_54 {dimension_numbers = #tpu.dot_dimension_numbers<[1], [0], [0], [1], [0, 0, 1, 1], [], []>} : vector<8x256xf32>, vector<256x16xf32>, vector<8x16xf32> -> vector<8x16xf32>
    %95 = vector.broadcast %93 : vector<1x16xf32> to vector<8x16xf32>
    %96 = arith.addf %94, %95 : vector<8x16xf32>
    %97 = arith.addf %96, %0 : vector<8x16xf32>
    %c0_55 = arith.constant 0 : index
    %c0_56 = arith.constant 0 : index
    %98 = vector.load %arg18[%c0_55, %c0_56] : memref<8x16xf32, #tpu.memory_space<vmem>>, vector<8x16xf32>
    tpu.vector_store %arg18[%c0_55, %c0_56], %97 {strides = array<i32>} : memref<8x16xf32, #tpu.memory_space<vmem>>, vector<8x16xf32>,
    return
  }
  func.func @transform_0(%arg0: i32) -> (i32, i32) {
    %c0_i32 = arith.constant 0 : i32
    %c0_i32_0 = arith.constant 0 : i32
    return %arg0, %c0_i32 : i32, i32
  }
  func.func @transform_1(%arg0: i32) -> (i32, i32) {
    %c0_i32 = arith.constant 0 : i32
    %c0_i32_0 = arith.constant 0 : i32
    return %arg0, %c0_i32 : i32, i32
  }
  func.func @transform_2(%arg0: i32) -> (i32, i32) {
    %c0_i32 = arith.constant 0 : i32
    %c0_i32_0 = arith.constant 0 : i32
    %c0_i32_1 = arith.constant 0 : i32
    return %c0_i32, %c0_i32_0 : i32, i32
  }
  func.func @transform_3(%arg0: i32) -> (i32, i32) {
    %c0_i32 = arith.constant 0 : i32
    %c0_i32_0 = arith.constant 0 : i32
    %c0_i32_1 = arith.constant 0 : i32
    return %c0_i32, %c0_i32_0 : i32, i32
  }
  func.func @transform_4(%arg0: i32) -> (i32, i32) {
    %c0_i32 = arith.constant 0 : i32
    %c0_i32_0 = arith.constant 0 : i32
    %c0_i32_1 = arith.constant 0 : i32
    return %c0_i32, %c0_i32_0 : i32, i32
  }
  func.func @transform_5(%arg0: i32) -> (i32, i32) {
    %c0_i32 = arith.constant 0 : i32
    %c0_i32_0 = arith.constant 0 : i32
    %c0_i32_1 = arith.constant 0 : i32
    return %c0_i32, %c0_i32_0 : i32, i32
  }
  func.func @transform_6(%arg0: i32) -> (i32, i32) {
    %c0_i32 = arith.constant 0 : i32
    %c0_i32_0 = arith.constant 0 : i32
    %c0_i32_1 = arith.constant 0 : i32
    return %c0_i32, %c0_i32_0 : i32, i32
  }
  func.func @transform_7(%arg0: i32) -> (i32, i32) {
    %c0_i32 = arith.constant 0 : i32
    %c0_i32_0 = arith.constant 0 : i32
    %c0_i32_1 = arith.constant 0 : i32
    return %c0_i32, %c0_i32_0 : i32, i32
  }
  func.func @transform_8(%arg0: i32) -> (i32, i32) {
    %c0_i32 = arith.constant 0 : i32
    %c0_i32_0 = arith.constant 0 : i32
    %c0_i32_1 = arith.constant 0 : i32
    return %c0_i32, %c0_i32_0 : i32, i32
  }
  func.func @transform_9(%arg0: i32) -> (i32, i32) {
    %c0_i32 = arith.constant 0 : i32
    %c0_i32_0 = arith.constant 0 : i32
    %c0_i32_1 = arith.constant 0 : i32
    return %c0_i32, %c0_i32_0 : i32, i32
  }
  func.func @transform_10(%arg0: i32) -> (i32, i32) {
    %c0_i32 = arith.constant 0 : i32
    %c0_i32_0 = arith.constant 0 : i32
    %c0_i32_1 = arith.constant 0 : i32
    return %c0_i32, %c0_i32_0 : i32, i32
  }
  func.func @transform_11(%arg0: i32) -> (i32, i32) {
    %c0_i32 = arith.constant 0 : i32
    %c0_i32_0 = arith.constant 0 : i32
    %c0_i32_1 = arith.constant 0 : i32
    return %c0_i32, %c0_i32_0 : i32, i32
  }
  func.func @transform_12(%arg0: i32) -> (i32, i32) {
    %c0_i32 = arith.constant 0 : i32
    %c0_i32_0 = arith.constant 0 : i32
    %c0_i32_1 = arith.constant 0 : i32
    return %c0_i32, %c0_i32_0 : i32, i32
  }
  func.func @transform_13(%arg0: i32) -> (i32, i32) {
    %c0_i32 = arith.constant 0 : i32
    %c0_i32_0 = arith.constant 0 : i32
    %c0_i32_1 = arith.constant 0 : i32
    return %c0_i32, %c0_i32_0 : i32, i32
  }
  func.func @transform_14(%arg0: i32) -> (i32, i32) {
    %c0_i32 = arith.constant 0 : i32
    %c0_i32_0 = arith.constant 0 : i32
    %c0_i32_1 = arith.constant 0 : i32
    return %c0_i32, %c0_i32_0 : i32, i32
  }
  func.func @transform_15(%arg0: i32) -> (i32, i32) {
    %c0_i32 = arith.constant 0 : i32
    %c0_i32_0 = arith.constant 0 : i32
    %c0_i32_1 = arith.constant 0 : i32
    return %c0_i32, %c0_i32_0 : i32, i32
  }
  func.func @transform_16(%arg0: i32) -> (i32, i32) {
    %c0_i32 = arith.constant 0 : i32
    %c0_i32_0 = arith.constant 0 : i32
    %c0_i32_1 = arith.constant 0 : i32
    return %c0_i32, %c0_i32_0 : i32, i32
  }
  func.func @transform_17(%arg0: i32) -> (i32, i32) {
    %c0_i32 = arith.constant 0 : i32
    %c0_i32_0 = arith.constant 0 : i32
    return %arg0, %c0_i32 : i32, i32
  }
}

</mosaic_0001>

<llo_original>
// kernel: latent_dynamics_forward.1
$region0: #{latent_dynamics_forward.1}
  #allocation0 [shape = 'u32[]', space=smem, size = 0x4, offset = 0x4, fixed_abs, tag = 'smem constant byte address 0x4 - core index']
  #allocation1 [shape = 'u32[72,128]{1,0:T(1,128)}', space=vmem, size = 0x9000, scoped, tag = 'internal scratch']
  %s0 = inlined_call_operand.vmem [shape: f32[8,16], index: 0, kind: input, shape index: {}]
  %s1 = inlined_call_operand.vmem [shape: f32[8,8], index: 1, kind: input, shape index: {}]
  %s2 = inlined_call_operand.vmem [shape: f32[16,256], index: 2, kind: input, shape index: {}]
  %s3 = inlined_call_operand.vmem [shape: f32[8,256], index: 3, kind: input, shape index: {}]
  %s4 = inlined_call_operand.vmem [shape: f32[1,256], index: 4, kind: input, shape index: {}]
  %s5 = inlined_call_operand.vmem [shape: f32[1,256], index: 5, kind: input, shape index: {}]
  %s6 = inlined_call_operand.vmem [shape: f32[1,256], index: 6, kind: input, shape index: {}]
  %s7 = inlined_call_operand.hbm [shape: f32[256,256], index: 7, kind: input, shape index: {}]
  %s8 = inlined_call_operand.vmem [shape: f32[1,256], index: 8, kind: input, shape index: {}]
  %s9 = inlined_call_operand.vmem [shape: f32[1,256], index: 9, kind: input, shape index: {}]
  %s10 = inlined_call_operand.vmem [shape: f32[1,256], index: 10, kind: input, shape index: {}]
  %s11 = inlined_call_operand.hbm [shape: f32[256,256], index: 11, kind: input, shape index: {}]
  %s12 = inlined_call_operand.vmem [shape: f32[1,256], index: 12, kind: input, shape index: {}]
  %s13 = inlined_call_operand.vmem [shape: f32[1,256], index: 13, kind: input, shape index: {}]
  %s14 = inlined_call_operand.vmem [shape: f32[1,256], index: 14, kind: input, shape index: {}]
  %s15 = inlined_call_operand.vmem [shape: f32[256,16], index: 15, kind: input, shape index: {}]
  %s16 = inlined_call_operand.vmem [shape: f32[1,16], index: 16, kind: input, shape index: {}]
  %s17 = inlined_call_operand.vmem [shape: f32[8,16], index: 17, kind: output, shape index: {}]
  %s18 = sld [smem:[#allocation0]]
  $region86: #{latent_dynamics_forward.1} parent=0
    _
  %s20 = ssub.s32 1, %s18
  %s21 = scalar_select 0, %s20, %s18
  $region1: #{latent_dynamics_forward.1} parent=0
    #allocation2 [shape = 'u8[262144]{0}', space=vmem, size = 0x40000, scoped, tag = 'input window, operand 7, single buffered']
    #allocation3 [shape = 's32[1]{0}', space=sflag, size = 0x4, scoped, tag = 'scoped memory for latent_dynamics_forward.1']
    #allocation4 [shape = 'u8[262144]{0}', space=vmem, size = 0x40000, scoped, tag = 'input window, operand 11, single buffered']
    #allocation5 [shape = 's32[1]{0}', space=sflag, size = 0x4, scoped, tag = 'scoped memory for latent_dynamics_forward.1']
    %22 = vsyncpa [#allocation3], 0
    %23 = vsyncpa [#allocation5], 0
    // Predicated region
    $region2: #{latent_dynamics_forward.1} parent=1 // pred_check
      _
    $region3: #{latent_dynamics_forward.1} parent=1 // pred_check_branch
      %25 = sbr.rel (0) target = $region5
    $region4: #{latent_dynamics_forward.1} parent=1 // pred_region
      _
    $region5: #{latent_dynamics_forward.1} parent=1 // pred_fallthru
      _
    // Predicated region
    $region6: #{latent_dynamics_forward.1} parent=1 // pred_check
      _
    $region7: #{latent_dynamics_forward.1} parent=1 // pred_check_branch
      %27 = sbr.rel (0) target = $region9
    $region8: #{latent_dynamics_forward.1} parent=1 // pred_region
      _
    $region9: #{latent_dynamics_forward.1} parent=1 // pred_fallthru
      _
    // Predicated region
    $region10: #{latent_dynamics_forward.1} parent=1 // pred_check
      _
    $region11: #{latent_dynamics_forward.1} parent=1 // pred_check_branch
      %29 = sbr.rel (0) target = $region13
    $region12: #{latent_dynamics_forward.1} parent=1 // pred_region
      _
    $region13: #{latent_dynamics_forward.1} parent=1 // pred_fallthru
      _
    // Predicated region
    $region14: #{latent_dynamics_forward.1} parent=1 // pred_check
      _
    $region15: #{latent_dynamics_forward.1} parent=1 // pred_check_branch
      %31 = sbr.rel (0) target = $region17
    $region16: #{latent_dynamics_forward.1} parent=1 // pred_region
      _
    $region17: #{latent_dynamics_forward.1} parent=1 // pred_fallthru
      _
    // Predicated region
    $region18: #{latent_dynamics_forward.1} parent=1 // pred_check
      _
    $region19: #{latent_dynamics_forward.1} parent=1 // pred_check_branch
      %33 = sbr.rel (0) target = $region21
    $region20: #{latent_dynamics_forward.1} parent=1 // pred_region
      _
    $region21: #{latent_dynamics_forward.1} parent=1 // pred_fallthru
      _
    // Predicated region
    $region22: #{latent_dynamics_forward.1} parent=1 // pred_check
      _
    $region23: #{latent_dynamics_forward.1} parent=1 // pred_check_branch
      %35 = sbr.rel (0) target = $region25
    $region24: #{latent_dynamics_forward.1} parent=1 // pred_region
      _
    $region25: #{latent_dynamics_forward.1} parent=1 // pred_fallthru
      _
    // Predicated region
    $region26: #{latent_dynamics_forward.1} parent=1 // pred_check
      _
    $region27: #{latent_dynamics_forward.1} parent=1 // pred_check_branch
      %37 = sbr.rel (0) target = $region29
    $region28: #{latent_dynamics_forward.1} parent=1 // pred_region
      _
    $region29: #{latent_dynamics_forward.1} parent=1 // pred_fallthru
      _
    // Predicated region
    $region30: #{latent_dynamics_forward.1} parent=1 // pred_check
      _
    $region31: #{latent_dynamics_forward.1} parent=1 // pred_check_branch
      %39 = sbr.rel (0) target = $region33
    $region32: #{latent_dynamics_forward.1} parent=1 // pred_region
      %41 = vsyncadd [#allocation3], 0
      %s42 = sshll.u32 %s7, 4
      %s43 = int_to_ptr.hbm [resolvable:$true] %s42
      %s44 = sshll.u32 [#allocation2], 4
      %s45 = int_to_ptr.vmem [resolvable:$true] %s44
      %50 = dma.hbm_to_vmem [thread:$0]  %s43, 8192, %s45, [#allocation3], 256, 256, 16
    $region33: #{latent_dynamics_forward.1} parent=1 // pred_fallthru
      _
    // Predicated region
    $region34: #{latent_dynamics_forward.1} parent=1 // pred_check
      _
    $region35: #{latent_dynamics_forward.1} parent=1 // pred_check_branch
      %52 = sbr.rel (0) target = $region37
    $region36: #{latent_dynamics_forward.1} parent=1 // pred_region
      _
    $region37: #{latent_dynamics_forward.1} parent=1 // pred_fallthru
      _
    // Predicated region
    $region38: #{latent_dynamics_forward.1} parent=1 // pred_check
      _
    $region39: #{latent_dynamics_forward.1} parent=1 // pred_check_branch
      %54 = sbr.rel (0) target = $region41
    $region40: #{latent_dynamics_forward.1} parent=1 // pred_region
      _
    $region41: #{latent_dynamics_forward.1} parent=1 // pred_fallthru
      _
    // Predicated region
    $region42: #{latent_dynamics_forward.1} parent=1 // pred_check
      _
    $region43: #{latent_dynamics_forward.1} parent=1 // pred_check_branch
      %56 = sbr.rel (0) target = $region45
    $region44: #{latent_dynamics_forward.1} parent=1 // pred_region
      _
    $region45: #{latent_dynamics_forward.1} parent=1 // pred_fallthru
      _
    // Predicated region
    $region46: #{latent_dynamics_forward.1} parent=1 // pred_check
      _
    $region47: #{latent_dynamics_forward.1} parent=1 // pred_check_branch
      %58 = sbr.rel (0) target = $region49
    $region48: #{latent_dynamics_forward.1} parent=1 // pred_region
      %60 = vsyncadd [#allocation5], 0
      %s61 = sshll.u32 %s11, 4
      %s62 = int_to_ptr.hbm [resolvable:$true] %s61
      %s63 = sshll.u32 [#allocation4], 4
      %s64 = int_to_ptr.vmem [resolvable:$true] %s63
      %69 = dma.hbm_to_vmem [thread:$0]  %s62, 8192, %s64, [#allocation5], 256, 256, 16
    $region49: #{latent_dynamics_forward.1} parent=1 // pred_fallthru
      _
    // Predicated region
    $region50: #{latent_dynamics_forward.1} parent=1 // pred_check
      _
    $region51: #{latent_dynamics_forward.1} parent=1 // pred_check_branch
      %71 = sbr.rel (0) target = $region53
    $region52: #{latent_dynamics_forward.1} parent=1 // pred_region
      _
    $region53: #{latent_dynamics_forward.1} parent=1 // pred_fallthru
      _
    // Predicated region
    $region54: #{latent_dynamics_forward.1} parent=1 // pred_check
      _
    $region55: #{latent_dynamics_forward.1} parent=1 // pred_check_branch
      %73 = sbr.rel (0) target = $region57
    $region56: #{latent_dynamics_forward.1} parent=1 // pred_region
      _
    $region57: #{latent_dynamics_forward.1} parent=1 // pred_fallthru
      _
    // Predicated region
    $region58: #{latent_dynamics_forward.1} parent=1 // pred_check
      _
    $region59: #{latent_dynamics_forward.1} parent=1 // pred_check_branch
      %75 = sbr.rel (0) target = $region61
    $region60: #{latent_dynamics_forward.1} parent=1 // pred_region
      _
    $region61: #{latent_dynamics_forward.1} parent=1 // pred_fallthru
      _
    // Predicated region
    $region62: #{latent_dynamics_forward.1} parent=1 // pred_check
      _
    $region63: #{latent_dynamics_forward.1} parent=1 // pred_check_branch
      %77 = sbr.rel (0) target = $region65
    $region64: #{latent_dynamics_forward.1} parent=1 // pred_region
      _
    $region65: #{latent_dynamics_forward.1} parent=1 // pred_fallthru
      _
    // Predicated region
    $region66: #{latent_dynamics_forward.1} parent=1 // pred_check
      _
    $region67: #{latent_dynamics_forward.1} parent=1 // pred_check_branch
      %79 = sbr.rel (0) target = $region69
    $region68: #{latent_dynamics_forward.1} parent=1 // pred_region
      _
    $region69: #{latent_dynamics_forward.1} parent=1 // pred_fallthru
      _
    // Predicated region
    $region70: #{latent_dynamics_forward.1} parent=1 // pred_check
      _
    $region71: #{latent_dynamics_forward.1} parent=1 // pred_check_branch
      %81 = sbr.rel (0) target = $region73
    $region72: #{latent_dynamics_forward.1} parent=1 // pred_region
      %83 = dma.done [#allocation3], 8192
    $region73: #{latent_dynamics_forward.1} parent=1 // pred_fallthru
      _
    // Predicated region
    $region74: #{latent_dynamics_forward.1} parent=1 // pred_check
      _
    $region75: #{latent_dynamics_forward.1} parent=1 // pred_check_branch
      %85 = sbr.rel (0) target = $region77
    $region76: #{latent_dynamics_forward.1} parent=1 // pred_region
      %87 = dma.done [#allocation5], 8192
    $region77: #{latent_dynamics_forward.1} parent=1 // pred_fallthru
      _
    %v88 = vld [vmem:[%s0] sm:$0xff]
    %v89 = vld [vmem:[%s1] sm:$0xff]
    %v90 = vld [vmem:[%s2] sm:$0xff]
    %v91 = vld [vmem:[%s2 + $0x8] sm:$0xff]
    %v92 = vld [vmem:[%s2 + $0x10] sm:$0xff]
    %v93 = vld [vmem:[%s2 + $0x18] sm:$0xff]
    %v94 = vld [vmem:[%s3] sm:$0xff]
    %v95 = vld [vmem:[%s3 + $0x8] sm:$0xff]
    %vm96 = vcmask 64512
    %v98 = vsel %vm96, %v89, 0
    %100 = vmatpush.msra.mxu0 0.0
    %101 = vmatpush.msra.mxu0 0.0
    %102 = vmatpush.msra.mxu0 0.0
    %103 = vmatpush.msra.mxu0 0.0
    %104 = vmatpush.msra.mxu0 0.0
    %105 = vmatpush.msra.mxu0 0.0
    %106 = vmatpush.msra.mxu0 0.0
    %107 = vmatpush.msra.mxu0 0.0
    %108 = vmatpush.msra.mxu0 0.0
    %109 = vmatpush.msra.mxu0 0.0
    %110 = vmatpush.msra.mxu0 0.0
    %111 = vmatpush.msra.mxu0 0.0
    %112 = vmatpush.msra.mxu0 0.0
    %113 = vmatpush.msra.mxu0 0.0
    %114 = vmatpush.msra.mxu0 0.0
    %115 = vmatpush.msra.mxu0 %v94
    %116 = vmatmul.f32.gmra.mxu0 %v98
    %v117 = vpop.f32.mrf.mxu0
    %v118 = vadd.f32 0.0, %v117
    %119 = vdwg.mxu0
    %120 = vmatpush.msra.mxu0 0.0
    %121 = vmatpush.msra.mxu0 0.0
    %122 = vmatpush.msra.mxu0 0.0
    %123 = vmatpush.msra.mxu0 0.0
    %124 = vmatpush.msra.mxu0 0.0
    %125 = vmatpush.msra.mxu0 0.0
    %126 = vmatpush.msra.mxu0 0.0
    %127 = vmatpush.msra.mxu0 0.0
    %128 = vmatpush.msra.mxu0 0.0
    %129 = vmatpush.msra.mxu0 0.0
    %130 = vmatpush.msra.mxu0 0.0
    %131 = vmatpush.msra.mxu0 0.0
    %132 = vmatpush.msra.mxu0 0.0
    %133 = vmatpush.msra.mxu0 0.0
    %134 = vmatpush.msra.mxu0 0.0
    %135 = vmatpush.msra.mxu0 %v95
    %136 = vmatmul.f32.gmra.mxu0 %v98
    %v137 = vpop.f32.mrf.mxu0
    %v138 = vadd.f32 0.0, %v137
    %139 = vdwg.mxu0
    %vm140 = vcmask 130048
    %v142 = vsel %vm140, %v88, 0
    %144 = vmatpush.msra.mxu0 0.0
    %145 = vmatpush.msra.mxu0 0.0
    %146 = vmatpush.msra.mxu0 0.0
    %147 = vmatpush.msra.mxu0 0.0
    %148 = vmatpush.msra.mxu0 0.0
    %149 = vmatpush.msra.mxu0 0.0
    %150 = vmatpush.msra.mxu0 0.0
    %151 = vmatpush.msra.mxu0 0.0
    %152 = vmatpush.msra.mxu0 0.0
    %153 = vmatpush.msra.mxu0 0.0
    %154 = vmatpush.msra.mxu0 0.0
    %155 = vmatpush.msra.mxu0 0.0
    %156 = vmatpush.msra.mxu0 0.0
    %157 = vmatpush.msra.mxu0 0.0
    %158 = vmatpush.msra.mxu0 %v92
    %159 = vmatpush.msra.mxu0 %v90
    %160 = vmatmul.f32.gmra.mxu0 %v142
    %v161 = vpop.f32.mrf.mxu0
    %v162 = vadd.f32 %v118, %v161
    %163 = vdwg.mxu0
    %164 = vmatpush.msra.mxu0 0.0
    %165 = vmatpush.msra.mxu0 0.0
    %166 = vmatpush.msra.mxu0 0.0
    %167 = vmatpush.msra.mxu0 0.0
    %168 = vmatpush.msra.mxu0 0.0
    %169 = vmatpush.msra.mxu0 0.0
    %170 = vmatpush.msra.mxu0 0.0
    %171 = vmatpush.msra.mxu0 0.0
    %172 = vmatpush.msra.mxu0 0.0
    %173 = vmatpush.msra.mxu0 0.0
    %174 = vmatpush.msra.mxu0 0.0
    %175 = vmatpush.msra.mxu0 0.0
    %176 = vmatpush.msra.mxu0 0.0
    %177 = vmatpush.msra.mxu0 0.0
    %178 = vmatpush.msra.mxu0 %v93
    %179 = vmatpush.msra.mxu0 %v91
    %180 = vmatmul.f32.gmra.mxu0 %v142
    %v181 = vpop.f32.mrf.mxu0
    %v182 = vadd.f32 %v138, %v181
    %183 = vdwg.mxu0
    %v184 = vld [vmem:[%s4] sm:$0x3]
    %v186 = vperm.slane %v184, 0
    %v187 = vperm.slane %v184, 1
    %v190 = vadd.f32 %v162, %v186
    %v191 = vadd.f32 %v182, %v187
    %v192 = vld [vmem:[%s5] sm:$0x3]
    %v193 = vld [vmem:[%s6] sm:$0x3]
    %v194 = vadd.f32 %v190, %v191
    %195 = vadd.xlane.f32.xlu0 %v194
    %v196 = vpop.xlane.xlu0 %195
    %v197 = vrcp.pop 256.0
    %v198 = vmul.f32 256.0, %v197
    %v199 = vsub.f32 1.0, %v198
    %v200 = vmul.f32 %v197, %v199
    %v201 = vadd.f32 %v197, %v200
    %vm202 = vweird.f32 %v197
    %v203 = vsel %vm202, %v197, %v201
    %v204 = vmul.f32 %v196, %v203
    %v205 = vsub.f32 %v190, %v204
    %v206 = vsub.f32 %v191, %v204
    %v207 = vmul.f32 %v205, %v205
    %v208 = vmul.f32 %v206, %v206
    %v209 = vadd.f32 %v207, %v208
    %210 = vadd.xlane.f32.xlu0 %v209
    %v211 = vpop.xlane.xlu0 %210
    %v212 = vmul.f32 %v211, %v203
    %v213 = vadd.f32 %v212, 1e-05
    %v214 = vrsqrt.pop %v213
    %v215 = vmul.f32 %v214, %v213
    %v216 = vmul.f32 %v215, %v214
    %v217 = vmul.f32 0.5, %v216
    %v218 = vsub.f32 1.5, %v217
    %v219 = vmul.f32 %v214, %v218
    %vm220 = vweird.f32 %v213
    %vm221 = vweird.f32 %v214
    %vm222 = vmor %vm220, %vm221
    %v223 = vsel %vm222, %v214, %v219
    %v224 = vmul.f32 %v205, %v223
    %v225 = vmul.f32 %v206, %v223
    %v227 = vperm.slane %v192, 0
    %v228 = vperm.slane %v192, 1
    %v231 = vmul.f32 %v224, %v227
    %v232 = vmul.f32 %v225, %v228
    %v234 = vperm.slane %v193, 0
    %v235 = vperm.slane %v193, 1
    %v238 = vadd.f32 %v231, %v234
    %v239 = vadd.f32 %v232, %v235
    %v240 = vmax.f32 %v238, 0.0
    %v241 = vmax.f32 %v239, 0.0
    %v242 = vld [vmem:[#allocation2] sm:$0xff]
    %v243 = vld [vmem:[#allocation2 + $0x8] sm:$0xff]
    %v244 = vld [vmem:[#allocation2 + $0x10] sm:$0xff]
    %v245 = vld [vmem:[#allocation2 + $0x18] sm:$0xff]
    %v246 = vld [vmem:[#allocation2 + $0x20] sm:$0xff]
    %v247 = vld [vmem:[#allocation2 + $0x28] sm:$0xff]
    %v248 = vld [vmem:[#allocation2 + $0x30] sm:$0xff]
    %v249 = vld [vmem:[#allocation2 + $0x38] sm:$0xff]
    %v250 = vld [vmem:[#allocation2 + $0x40] sm:$0xff]
    %v251 = vld [vmem:[#allocation2 + $0x48] sm:$0xff]
    %v252 = vld [vmem:[#allocation2 + $0x50] sm:$0xff]
    %v253 = vld [vmem:[#allocation2 + $0x58] sm:$0xff]
    %v254 = vld [vmem:[#allocation2 + $0x60] sm:$0xff]
    %v255 = vld [vmem:[#allocation2 + $0x68] sm:$0xff]
    %v256 = vld [vmem:[#allocation2 + $0x70] sm:$0xff]
    %v257 = vld [vmem:[#allocation2 + $0x78] sm:$0xff]
    %v258 = vld [vmem:[#allocation2 + $0x80] sm:$0xff]
    %v259 = vld [vmem:[#allocation2 + $0x88] sm:$0xff]
    %v260 = vld [vmem:[#allocation2 + $0x90] sm:$0xff]
    %v261 = vld [vmem:[#allocation2 + $0x98] sm:$0xff]
    %v262 = vld [vmem:[#allocation2 + $0xa0] sm:$0xff]
    %v263 = vld [vmem:[#allocation2 + $0xa8] sm:$0xff]
    %v264 = vld [vmem:[#allocation2 + $0xb0] sm:$0xff]
    %v265 = vld [vmem:[#allocation2 + $0xb8] sm:$0xff]
    %v266 = vld [vmem:[#allocation2 + $0xc0] sm:$0xff]
    %v267 = vld [vmem:[#allocation2 + $0xc8] sm:$0xff]
    %v268 = vld [vmem:[#allocation2 + $0xd0] sm:$0xff]
    %v269 = vld [vmem:[#allocation2 + $0xd8] sm:$0xff]
    %v270 = vld [vmem:[#allocation2 + $0xe0] sm:$0xff]
    %v271 = vld [vmem:[#allocation2 + $0xe8] sm:$0xff]
    %v272 = vld [vmem:[#allocation2 + $0xf0] sm:$0xff]
    %v273 = vld [vmem:[#allocation2 + $0xf8] sm:$0xff]
    %v274 = vld [vmem:[#allocation2 + $0x100] sm:$0xff]
    %v275 = vld [vmem:[#allocation2 + $0x108] sm:$0xff]
    %v276 = vld [vmem:[#allocation2 + $0x110] sm:$0xff]
    %v277 = vld [vmem:[#allocation2 + $0x118] sm:$0xff]
    %v278 = vld [vmem:[#allocation2 + $0x120] sm:$0xff]
    %v279 = vld [vmem:[#allocation2 + $0x128] sm:$0xff]
    %v280 = vld [vmem:[#allocation2 + $0x130] sm:$0xff]
    %v281 = vld [vmem:[#allocation2 + $0x138] sm:$0xff]
    %v282 = vld [vmem:[#allocation2 + $0x140] sm:$0xff]
    %v283 = vld [vmem:[#allocation2 + $0x148] sm:$0xff]
    %v284 = vld [vmem:[#allocation2 + $0x150] sm:$0xff]
    %v285 = vld [vmem:[#allocation2 + $0x158] sm:$0xff]
    %v286 = vld [vmem:[#allocation2 + $0x160] sm:$0xff]
    %v287 = vld [vmem:[#allocation2 + $0x168] sm:$0xff]
    %v288 = vld [vmem:[#allocation2 + $0x170] sm:$0xff]
    %v289 = vld [vmem:[#allocation2 + $0x178] sm:$0xff]
    %v290 = vld [vmem:[#allocation2 + $0x180] sm:$0xff]
    %v291 = vld [vmem:[#allocation2 + $0x188] sm:$0xff]
    %v292 = vld [vmem:[#allocation2 + $0x190] sm:$0xff]
    %v293 = vld [vmem:[#allocation2 + $0x198] sm:$0xff]
    %v294 = vld [vmem:[#allocation2 + $0x1a0] sm:$0xff]
    %v295 = vld [vmem:[#allocation2 + $0x1a8] sm:$0xff]
    %v296 = vld [vmem:[#allocation2 + $0x1b0] sm:$0xff]
    %v297 = vld [vmem:[#allocation2 + $0x1b8] sm:$0xff]
    %v298 = vld [vmem:[#allocation2 + $0x1c0] sm:$0xff]
    %v299 = vld [vmem:[#allocation2 + $0x1c8] sm:$0xff]
    %v300 = vld [vmem:[#allocation2 + $0x1d0] sm:$0xff]
    %v301 = vld [vmem:[#allocation2 + $0x1d8] sm:$0xff]
    %v302 = vld [vmem:[#allocation2 + $0x1e0] sm:$0xff]
    %v303 = vld [vmem:[#allocation2 + $0x1e8] sm:$0xff]
    %v304 = vld [vmem:[#allocation2 + $0x1f0] sm:$0xff]
    %v305 = vld [vmem:[#allocation2 + $0x1f8] sm:$0xff]
    %v306 = vld [vmem:[%s8] sm:$0x3]
    %v307 = vld [vmem:[%s9] sm:$0x3]
    %v308 = vld [vmem:[%s10] sm:$0x3]
    %v310 = vperm.slane %v306, 0
    %v311 = vperm.slane %v306, 1
    %314 = vmatpush.msra.mxu0 %v272
    %315 = vmatpush.msra.mxu0 %v270
    %316 = vmatpush.msra.mxu0 %v268
    %317 = vmatpush.msra.mxu0 %v266
    %318 = vmatpush.msra.mxu0 %v264
    %319 = vmatpush.msra.mxu0 %v262
    %320 = vmatpush.msra.mxu0 %v260
    %321 = vmatpush.msra.mxu0 %v258
    %322 = vmatpush.msra.mxu0 %v256
    %323 = vmatpush.msra.mxu0 %v254
    %324 = vmatpush.msra.mxu0 %v252
    %325 = vmatpush.msra.mxu0 %v250
    %326 = vmatpush.msra.mxu0 %v248
    %327 = vmatpush.msra.mxu0 %v246
    %328 = vmatpush.msra.mxu0 %v244
    %329 = vmatpush.msra.mxu0 %v242
    %330 = vmatmul.f32.gmra.mxu0 %v240
    %v331 = vpop.f32.mrf.mxu0
    %v332 = vadd.f32 %v310, %v331
    %333 = vdwg.mxu0
    %334 = vmatpush.msra.mxu0 %v304
    %335 = vmatpush.msra.mxu0 %v302
    %336 = vmatpush.msra.mxu0 %v300
    %337 = vmatpush.msra.mxu0 %v298
    %338 = vmatpush.msra.mxu0 %v296
    %339 = vmatpush.msra.mxu0 %v294
    %340 = vmatpush.msra.mxu0 %v292
    %341 = vmatpush.msra.mxu0 %v290
    %342 = vmatpush.msra.mxu0 %v288
    %343 = vmatpush.msra.mxu0 %v286
    %344 = vmatpush.msra.mxu0 %v284
    %345 = vmatpush.msra.mxu0 %v282
    %346 = vmatpush.msra.mxu0 %v280
    %347 = vmatpush.msra.mxu0 %v278
    %348 = vmatpush.msra.mxu0 %v276
    %349 = vmatpush.msra.mxu0 %v274
    %350 = vmatmul.f32.gmra.mxu0 %v241
    %v351 = vpop.f32.mrf.mxu0
    %v352 = vadd.f32 %v332, %v351
    %353 = vdwg.mxu0
    %354 = vmatpush.msra.mxu0 %v273
    %355 = vmatpush.msra.mxu0 %v271
    %356 = vmatpush.msra.mxu0 %v269
    %357 = vmatpush.msra.mxu0 %v267
    %358 = vmatpush.msra.mxu0 %v265
    %359 = vmatpush.msra.mxu0 %v263
    %360 = vmatpush.msra.mxu0 %v261
    %361 = vmatpush.msra.mxu0 %v259
    %362 = vmatpush.msra.mxu0 %v257
    %363 = vmatpush.msra.mxu0 %v255
    %364 = vmatpush.msra.mxu0 %v253
    %365 = vmatpush.msra.mxu0 %v251
    %366 = vmatpush.msra.mxu0 %v249
    %367 = vmatpush.msra.mxu0 %v247
    %368 = vmatpush.msra.mxu0 %v245
    %369 = vmatpush.msra.mxu0 %v243
    %370 = vmatmul.f32.gmra.mxu0 %v240
    %v371 = vpop.f32.mrf.mxu0
    %v372 = vadd.f32 %v311, %v371
    %373 = vdwg.mxu0
    %374 = vmatpush.msra.mxu0 %v305
    %375 = vmatpush.msra.mxu0 %v303
    %376 = vmatpush.msra.mxu0 %v301
    %377 = vmatpush.msra.mxu0 %v299
    %378 = vmatpush.msra.mxu0 %v297
    %379 = vmatpush.msra.mxu0 %v295
    %380 = vmatpush.msra.mxu0 %v293
    %381 = vmatpush.msra.mxu0 %v291
    %382 = vmatpush.msra.mxu0 %v289
    %383 = vmatpush.msra.mxu0 %v287
    %384 = vmatpush.msra.mxu0 %v285
    %385 = vmatpush.msra.mxu0 %v283
    %386 = vmatpush.msra.mxu0 %v281
    %387 = vmatpush.msra.mxu0 %v279
    %388 = vmatpush.msra.mxu0 %v277
    %389 = vmatpush.msra.mxu0 %v275
    %390 = vmatmul.f32.gmra.mxu0 %v241
    %v391 = vpop.f32.mrf.mxu0
    %v392 = vadd.f32 %v372, %v391
    %393 = vdwg.mxu0
    %v394 = vadd.f32 %v352, %v392
    %395 = vadd.xlane.f32.xlu0 %v394
    %v396 = vpop.xlane.xlu0 %395
    %v397 = vmul.f32 %v396, %v203
    %v398 = vsub.f32 %v352, %v397
    %v399 = vsub.f32 %v392, %v397
    %v400 = vmul.f32 %v398, %v398
    %v401 = vmul.f32 %v399, %v399
    %v402 = vadd.f32 %v400, %v401
    %403 = vadd.xlane.f32.xlu0 %v402
    %v404 = vpop.xlane.xlu0 %403
    %v405 = vmul.f32 %v404, %v203
    %v406 = vadd.f32 %v405, 1e-05
    %v407 = vrsqrt.pop %v406
    %v408 = vmul.f32 %v407, %v406
    %v409 = vmul.f32 %v408, %v407
    %v410 = vmul.f32 0.5, %v409
    %v411 = vsub.f32 1.5, %v410
    %v412 = vmul.f32 %v407, %v411
    %vm413 = vweird.f32 %v406
    %vm414 = vweird.f32 %v407
    %vm415 = vmor %vm413, %vm414
    %v416 = vsel %vm415, %v407, %v412
    %v417 = vmul.f32 %v398, %v416
    %v418 = vmul.f32 %v399, %v416
    %v420 = vperm.slane %v307, 0
    %v421 = vperm.slane %v307, 1
    %v424 = vmul.f32 %v417, %v420
    %v425 = vmul.f32 %v418, %v421
    %v427 = vperm.slane %v308, 0
    %v428 = vperm.slane %v308, 1
    %v431 = vadd.f32 %v424, %v427
    %v432 = vadd.f32 %v425, %v428
    %v433 = vmax.f32 %v431, 0.0
    %v434 = vmax.f32 %v432, 0.0
    %v435 = vld [vmem:[#allocation4] sm:$0xff]
    %v436 = vld [vmem:[#allocation4 + $0x8] sm:$0xff]
    %v437 = vld [vmem:[#allocation4 + $0x10] sm:$0xff]
    %v438 = vld [vmem:[#allocation4 + $0x18] sm:$0xff]
    %v439 = vld [vmem:[#allocation4 + $0x20] sm:$0xff]
    %v440 = vld [vmem:[#allocation4 + $0x28] sm:$0xff]
    %v441 = vld [vmem:[#allocation4 + $0x30] sm:$0xff]
    %v442 = vld [vmem:[#allocation4 + $0x38] sm:$0xff]
    %v443 = vld [vmem:[#allocation4 + $0x40] sm:$0xff]
    %v444 = vld [vmem:[#allocation4 + $0x48] sm:$0xff]
    %v445 = vld [vmem:[#allocation4 + $0x50] sm:$0xff]
    %v446 = vld [vmem:[#allocation4 + $0x58] sm:$0xff]
    %v447 = vld [vmem:[#allocation4 + $0x60] sm:$0xff]
    %v448 = vld [vmem:[#allocation4 + $0x68] sm:$0xff]
    %v449 = vld [vmem:[#allocation4 + $0x70] sm:$0xff]
    %v450 = vld [vmem:[#allocation4 + $0x78] sm:$0xff]
    %v451 = vld [vmem:[#allocation4 + $0x80] sm:$0xff]
    %v452 = vld [vmem:[#allocation4 + $0x88] sm:$0xff]
    %v453 = vld [vmem:[#allocation4 + $0x90] sm:$0xff]
    %v454 = vld [vmem:[#allocation4 + $0x98] sm:$0xff]
    %v455 = vld [vmem:[#allocation4 + $0xa0] sm:$0xff]
    %v456 = vld [vmem:[#allocation4 + $0xa8] sm:$0xff]
    %v457 = vld [vmem:[#allocation4 + $0xb0] sm:$0xff]
    %v458 = vld [vmem:[#allocation4 + $0xb8] sm:$0xff]
    %v459 = vld [vmem:[#allocation4 + $0xc0] sm:$0xff]
    %v460 = vld [vmem:[#allocation4 + $0xc8] sm:$0xff]
    %v461 = vld [vmem:[#allocation4 + $0xd0] sm:$0xff]
    %v462 = vld [vmem:[#allocation4 + $0xd8] sm:$0xff]
    %v463 = vld [vmem:[#allocation4 + $0xe0] sm:$0xff]
    %v464 = vld [vmem:[#allocation4 + $0xe8] sm:$0xff]
    %v465 = vld [vmem:[#allocation4 + $0xf0] sm:$0xff]
    %v466 = vld [vmem:[#allocation4 + $0xf8] sm:$0xff]
    %v467 = vld [vmem:[#allocation4 + $0x100] sm:$0xff]
    %v468 = vld [vmem:[#allocation4 + $0x108] sm:$0xff]
    %v469 = vld [vmem:[#allocation4 + $0x110] sm:$0xff]
    %v470 = vld [vmem:[#allocation4 + $0x118] sm:$0xff]
    %v471 = vld [vmem:[#allocation4 + $0x120] sm:$0xff]
    %v472 = vld [vmem:[#allocation4 + $0x128] sm:$0xff]
    %v473 = vld [vmem:[#allocation4 + $0x130] sm:$0xff]
    %v474 = vld [vmem:[#allocation4 + $0x138] sm:$0xff]
    %v475 = vld [vmem:[#allocation4 + $0x140] sm:$0xff]
    %v476 = vld [vmem:[#allocation4 + $0x148] sm:$0xff]
    %v477 = vld [vmem:[#allocation4 + $0x150] sm:$0xff]
    %v478 = vld [vmem:[#allocation4 + $0x158] sm:$0xff]
    %v479 = vld [vmem:[#allocation4 + $0x160] sm:$0xff]
    %v480 = vld [vmem:[#allocation4 + $0x168] sm:$0xff]
    %v481 = vld [vmem:[#allocation4 + $0x170] sm:$0xff]
    %v482 = vld [vmem:[#allocation4 + $0x178] sm:$0xff]
    %v483 = vld [vmem:[#allocation4 + $0x180] sm:$0xff]
    %v484 = vld [vmem:[#allocation4 + $0x188] sm:$0xff]
    %v485 = vld [vmem:[#allocation4 + $0x190] sm:$0xff]
    %v486 = vld [vmem:[#allocation4 + $0x198] sm:$0xff]
    %v487 = vld [vmem:[#allocation4 + $0x1a0] sm:$0xff]
    %v488 = vld [vmem:[#allocation4 + $0x1a8] sm:$0xff]
    %v489 = vld [vmem:[#allocation4 + $0x1b0] sm:$0xff]
    %v490 = vld [vmem:[#allocation4 + $0x1b8] sm:$0xff]
    %v491 = vld [vmem:[#allocation4 + $0x1c0] sm:$0xff]
    %v492 = vld [vmem:[#allocation4 + $0x1c8] sm:$0xff]
    %v493 = vld [vmem:[#allocation4 + $0x1d0] sm:$0xff]
    %v494 = vld [vmem:[#allocation4 + $0x1d8] sm:$0xff]
    %v495 = vld [vmem:[#allocation4 + $0x1e0] sm:$0xff]
    %v496 = vld [vmem:[#allocation4 + $0x1e8] sm:$0xff]
    %v497 = vld [vmem:[#allocation4 + $0x1f0] sm:$0xff]
    %v498 = vld [vmem:[#allocation4 + $0x1f8] sm:$0xff]
    %v499 = vld [vmem:[%s12] sm:$0x3]
    %v500 = vld [vmem:[%s13] sm:$0x3]
    %v501 = vld [vmem:[%s14] sm:$0x3]
    %v503 = vperm.slane %v499, 0
    %v504 = vperm.slane %v499, 1
    %507 = vmatpush.msra.mxu0 %v465
    %508 = vmatpush.msra.mxu0 %v463
    %509 = vmatpush.msra.mxu0 %v461
    %510 = vmatpush.msra.mxu0 %v459
    %511 = vmatpush.msra.mxu0 %v457
    %512 = vmatpush.msra.mxu0 %v455
    %513 = vmatpush.msra.mxu0 %v453
    %514 = vmatpush.msra.mxu0 %v451
    %515 = vmatpush.msra.mxu0 %v449
    %516 = vmatpush.msra.mxu0 %v447
    %517 = vmatpush.msra.mxu0 %v445
    %518 = vmatpush.msra.mxu0 %v443
    %519 = vmatpush.msra.mxu0 %v441
    %520 = vmatpush.msra.mxu0 %v439
    %521 = vmatpush.msra.mxu0 %v437
    %522 = vmatpush.msra.mxu0 %v435
    %523 = vmatmul.f32.gmra.mxu0 %v433
    %v524 = vpop.f32.mrf.mxu0
    %v525 = vadd.f32 %v503, %v524
    %526 = vdwg.mxu0
    %527 = vmatpush.msra.mxu0 %v497
    %528 = vmatpush.msra.mxu0 %v495
    %529 = vmatpush.msra.mxu0 %v493
    %530 = vmatpush.msra.mxu0 %v491
    %531 = vmatpush.msra.mxu0 %v489
    %532 = vmatpush.msra.mxu0 %v487
    %533 = vmatpush.msra.mxu0 %v485
    %534 = vmatpush.msra.mxu0 %v483
    %535 = vmatpush.msra.mxu0 %v481
    %536 = vmatpush.msra.mxu0 %v479
    %537 = vmatpush.msra.mxu0 %v477
    %538 = vmatpush.msra.mxu0 %v475
    %539 = vmatpush.msra.mxu0 %v473
    %540 = vmatpush.msra.mxu0 %v471
    %541 = vmatpush.msra.mxu0 %v469
    %542 = vmatpush.msra.mxu0 %v467
    %543 = vmatmul.f32.gmra.mxu0 %v434
    %v544 = vpop.f32.mrf.mxu0
    %v545 = vadd.f32 %v525, %v544
    %546 = vdwg.mxu0
    %547 = vmatpush.msra.mxu0 %v466
    %548 = vmatpush.msra.mxu0 %v464
    %549 = vmatpush.msra.mxu0 %v462
    %550 = vmatpush.msra.mxu0 %v460
    %551 = vmatpush.msra.mxu0 %v458
    %552 = vmatpush.msra.mxu0 %v456
    %553 = vmatpush.msra.mxu0 %v454
    %554 = vmatpush.msra.mxu0 %v452
    %555 = vmatpush.msra.mxu0 %v450
    %556 = vmatpush.msra.mxu0 %v448
    %557 = vmatpush.msra.mxu0 %v446
    %558 = vmatpush.msra.mxu0 %v444
    %559 = vmatpush.msra.mxu0 %v442
    %560 = vmatpush.msra.mxu0 %v440
    %561 = vmatpush.msra.mxu0 %v438
    %562 = vmatpush.msra.mxu0 %v436
    %563 = vmatmul.f32.gmra.mxu0 %v433
    %v564 = vpop.f32.mrf.mxu0
    %v565 = vadd.f32 %v504, %v564
    %566 = vdwg.mxu0
    %567 = vmatpush.msra.mxu0 %v498
    %568 = vmatpush.msra.mxu0 %v496
    %569 = vmatpush.msra.mxu0 %v494
    %570 = vmatpush.msra.mxu0 %v492
    %571 = vmatpush.msra.mxu0 %v490
    %572 = vmatpush.msra.mxu0 %v488
    %573 = vmatpush.msra.mxu0 %v486
    %574 = vmatpush.msra.mxu0 %v484
    %575 = vmatpush.msra.mxu0 %v482
    %576 = vmatpush.msra.mxu0 %v480
    %577 = vmatpush.msra.mxu0 %v478
    %578 = vmatpush.msra.mxu0 %v476
    %579 = vmatpush.msra.mxu0 %v474
    %580 = vmatpush.msra.mxu0 %v472
    %581 = vmatpush.msra.mxu0 %v470
    %582 = vmatpush.msra.mxu0 %v468
    %583 = vmatmul.f32.gmra.mxu0 %v434
    %v584 = vpop.f32.mrf.mxu0
    %v585 = vadd.f32 %v565, %v584
    %586 = vdwg.mxu0
    %v587 = vadd.f32 %v545, %v585
    %588 = vadd.xlane.f32.xlu0 %v587
    %v589 = vpop.xlane.xlu0 %588
    %v590 = vmul.f32 %v589, %v203
    %v591 = vsub.f32 %v545, %v590
    %v592 = vsub.f32 %v585, %v590
    %v593 = vmul.f32 %v591, %v591
    %v594 = vmul.f32 %v592, %v592
    %v595 = vadd.f32 %v593, %v594
    %596 = vadd.xlane.f32.xlu0 %v595
    %v597 = vpop.xlane.xlu0 %596
    %v598 = vmul.f32 %v597, %v203
    %v599 = vadd.f32 %v598, 1e-05
    %v600 = vrsqrt.pop %v599
    %v601 = vmul.f32 %v600, %v599
    %v602 = vmul.f32 %v601, %v600
    %v603 = vmul.f32 0.5, %v602
    %v604 = vsub.f32 1.5, %v603
    %v605 = vmul.f32 %v600, %v604
    %vm606 = vweird.f32 %v599
    %vm607 = vweird.f32 %v600
    %vm608 = vmor %vm606, %vm607
    %v609 = vsel %vm608, %v600, %v605
    %v610 = vmul.f32 %v591, %v609
    %v611 = vmul.f32 %v592, %v609
    %v613 = vperm.slane %v500, 0
    %v614 = vperm.slane %v500, 1
    %v617 = vmul.f32 %v610, %v613
    %v618 = vmul.f32 %v611, %v614
    %v620 = vperm.slane %v501, 0
    %v621 = vperm.slane %v501, 1
    %v624 = vadd.f32 %v617, %v620
    %v625 = vadd.f32 %v618, %v621
    %v626 = vmax.f32 %v624, 0.0
    %v627 = vmax.f32 %v625, 0.0
    %v628 = vld [vmem:[%s15] sm:$0xff]
    %v629 = vld [vmem:[%s15 + $0x8] sm:$0xff]
    %v630 = vld [vmem:[%s15 + $0x10] sm:$0xff]
    %v631 = vld [vmem:[%s15 + $0x18] sm:$0xff]
    %v632 = vld [vmem:[%s15 + $0x20] sm:$0xff]
    %v633 = vld [vmem:[%s15 + $0x28] sm:$0xff]
    %v634 = vld [vmem:[%s15 + $0x30] sm:$0xff]
    %v635 = vld [vmem:[%s15 + $0x38] sm:$0xff]
    %v636 = vld [vmem:[%s15 + $0x40] sm:$0xff]
    %v637 = vld [vmem:[%s15 + $0x48] sm:$0xff]
    %v638 = vld [vmem:[%s15 + $0x50] sm:$0xff]
    %v639 = vld [vmem:[%s15 + $0x58] sm:$0xff]
    %v640 = vld [vmem:[%s15 + $0x60] sm:$0xff]
    %v641 = vld [vmem:[%s15 + $0x68] sm:$0xff]
    %v642 = vld [vmem:[%s15 + $0x70] sm:$0xff]
    %v643 = vld [vmem:[%s15 + $0x78] sm:$0xff]
    %v644 = vld [vmem:[%s15 + $0x80] sm:$0xff]
    %v645 = vld [vmem:[%s15 + $0x88] sm:$0xff]
    %v646 = vld [vmem:[%s15 + $0x90] sm:$0xff]
    %v647 = vld [vmem:[%s15 + $0x98] sm:$0xff]
    %v648 = vld [vmem:[%s15 + $0xa0] sm:$0xff]
    %v649 = vld [vmem:[%s15 + $0xa8] sm:$0xff]
    %v650 = vld [vmem:[%s15 + $0xb0] sm:$0xff]
    %v651 = vld [vmem:[%s15 + $0xb8] sm:$0xff]
    %v652 = vld [vmem:[%s15 + $0xc0] sm:$0xff]
    %v653 = vld [vmem:[%s15 + $0xc8] sm:$0xff]
    %v654 = vld [vmem:[%s15 + $0xd0] sm:$0xff]
    %v655 = vld [vmem:[%s15 + $0xd8] sm:$0xff]
    %v656 = vld [vmem:[%s15 + $0xe0] sm:$0xff]
    %v657 = vld [vmem:[%s15 + $0xe8] sm:$0xff]
    %v658 = vld [vmem:[%s15 + $0xf0] sm:$0xff]
    %v659 = vld [vmem:[%s15 + $0xf8] sm:$0xff]
    %v660 = vld [vmem:[%s16] sm:$0x1]
    %v662 = vperm.slane %v660, 0
    %664 = vmatpush.msra.mxu0 %v643
    %665 = vmatpush.msra.mxu0 %v642
    %666 = vmatpush.msra.mxu0 %v641
    %667 = vmatpush.msra.mxu0 %v640
    %668 = vmatpush.msra.mxu0 %v639
    %669 = vmatpush.msra.mxu0 %v638
    %670 = vmatpush.msra.mxu0 %v637
    %671 = vmatpush.msra.mxu0 %v636
    %672 = vmatpush.msra.mxu0 %v635
    %673 = vmatpush.msra.mxu0 %v634
    %674 = vmatpush.msra.mxu0 %v633
    %675 = vmatpush.msra.mxu0 %v632
    %676 = vmatpush.msra.mxu0 %v631
    %677 = vmatpush.msra.mxu0 %v630
    %678 = vmatpush.msra.mxu0 %v629
    %679 = vmatpush.msra.mxu0 %v628
    %680 = vmatmul.f32.gmra.mxu0 %v626
    %v681 = vpop.f32.mrf.mxu0
    %v682 = vadd.f32 %v662, %v681
    %683 = vdwg.mxu0
    %684 = vmatpush.msra.mxu0 %v659
    %685 = vmatpush.msra.mxu0 %v658
    %686 = vmatpush.msra.mxu0 %v657
    %687 = vmatpush.msra.mxu0 %v656
    %688 = vmatpush.msra.mxu0 %v655
    %689 = vmatpush.msra.mxu0 %v654
    %690 = vmatpush.msra.mxu0 %v653
    %691 = vmatpush.msra.mxu0 %v652
    %692 = vmatpush.msra.mxu0 %v651
    %693 = vmatpush.msra.mxu0 %v650
    %694 = vmatpush.msra.mxu0 %v649
    %695 = vmatpush.msra.mxu0 %v648
    %696 = vmatpush.msra.mxu0 %v647
    %697 = vmatpush.msra.mxu0 %v646
    %698 = vmatpush.msra.mxu0 %v645
    %699 = vmatpush.msra.mxu0 %v644
    %700 = vmatmul.f32.gmra.mxu0 %v627
    %v701 = vpop.f32.mrf.mxu0
    %v702 = vadd.f32 %v682, %v701
    %703 = vdwg.mxu0
    %v704 = vadd.f32 %v702, %v88
    %705 = vst.msk [vmem:[%s17] sm:$0xff] %vm140, %v704
    // Predicated region
    $region78: #{latent_dynamics_forward.1} parent=1 // pred_check
      _
    $region79: #{latent_dynamics_forward.1} parent=1 // pred_check_branch
      %707 = sbr.rel (0) target = $region81
    $region80: #{latent_dynamics_forward.1} parent=1 // pred_region
      _
    $region81: #{latent_dynamics_forward.1} parent=1 // pred_fallthru
      _
    // Predicated region
    $region82: #{latent_dynamics_forward.1} parent=1 // pred_check
      _
    $region83: #{latent_dynamics_forward.1} parent=1 // pred_check_branch
      %709 = sbr.rel (0) target = $region85
    $region84: #{latent_dynamics_forward.1} parent=1 // pred_region
      _
    $region85: #{latent_dynamics_forward.1} parent=1 // pred_fallthru
      _
    %710 = vsyncpa [#allocation3], 1
    %711 = vsyncpa [#allocation5], 1

</llo_original>
